<compile_context>
chip_gen: v5e
topology: v5e:2x2
jax: 0.10.0
libtpu: 0.0.40
codegen_flags: <defaults>
</compile_context>

<pallas_src>
import functools

import jax
import jax.numpy as jnp
from jax import lax
from jax.experimental import pallas as pl
from jax.experimental.pallas import tpu as pltpu

_LANE = 128


def _round_up(x, m):
    return ((x + m - 1) // m) * m


def _mlp_kernel(layer_norm, eps, n_linear, x_ref, *refs):
    """One row-tile of the fused MLP.

    refs = (w0, b0, w1, b1, ..., [gamma, beta], out_ref).
    The row tile stays resident in VMEM across every layer; matmuls accumulate
    in f32 on the MXU, ReLU / GroupNorm run in f32 on the VPU.
    """
    out_ref = refs[-1]
    params = refs[:-1]

    h = x_ref[...].astype(jnp.float32)
    idx = 0
    for l in range(n_linear):
        w = params[idx][...].astype(jnp.float32); idx += 1        # (d_in, d_out)
        b = params[idx][...].astype(jnp.float32); idx += 1        # (1, d_out)
        h = jnp.dot(h, w, preferred_element_type=jnp.float32) + b
        if l < n_linear - 1:                                      # ReLU after all but last
            h = jnp.maximum(h, 0.0)

    if layer_norm:
        gamma = params[idx][...].astype(jnp.float32); idx += 1    # (1, out_dim)
        beta = params[idx][...].astype(jnp.float32); idx += 1     # (1, out_dim)
        mean = jnp.mean(h, axis=-1, keepdims=True)
        centered = h - mean
        var = jnp.mean(centered * centered, axis=-1, keepdims=True)
        h = centered * lax.rsqrt(var + eps)
        h = h * gamma + beta

    out_ref[...] = h.astype(out_ref.dtype)


def mlp_pallas(x, weights, biases, gamma=None, beta=None, *,
               layer_norm=True, eps=1e-5, max_tile_rows=4096,
               storage_dtype=None, vmem_budget_bytes=40 << 20):
    """Fused MLP (+ optional GroupNorm(1, out_dim)) over rows of x.

    x:          (N, in_dim)
    weights:    list of (d_in, d_out) matrices
    biases:     list of (d_out,) vectors
    gamma/beta: (out_dim,) GroupNorm affine params (if layer_norm)
    storage_dtype: optional HBM storage dtype for x / params (e.g. jnp.bfloat16
                   to halve HBM traffic); compute is always f32.
    """
    N, in_dim = x.shape
    out_dim = weights[-1].shape[1]
    n_linear = len(weights)

    st_dt = storage_dtype if storage_dtype is not None else x.dtype
    st_itemsize = jnp.dtype(st_dt).itemsize

    # ---------------- parameters at their REAL shapes (no lane padding) --------
    flat_params = []
    for w, b in zip(weights, biases):
        flat_params.append(w.astype(st_dt))
        flat_params.append(b.reshape(1, -1).astype(st_dt))
    if layer_norm:
        flat_params.append(gamma.reshape(1, -1).astype(st_dt))
        flat_params.append(beta.reshape(1, -1).astype(st_dt))
    param_bytes = sum(p.size * p.dtype.itemsize for p in flat_params)

    # ---------------- row tiling --------------------------------------------
    # VMEM footprint per row (lane dim of each buffer is padded to 128 inside
    # VMEM regardless of the logical width):
    max_feat = max([in_dim, out_dim] + [w.shape[1] for w in weights])
    per_row_bytes = (2 * _round_up(in_dim, _LANE) * st_itemsize       # x double-buffer
                     + 2 * _round_up(out_dim, _LANE) * 4              # out double-buffer
                     + 4 * _round_up(max_feat, _LANE) * 4)            # live intermediates
    fit_rows = max(8, ((vmem_budget_bytes - param_bytes) // per_row_bytes) // 8 * 8)
    max_tile = max(8, min(max_tile_rows, fit_rows))

    num_tiles = max(1, -(-N // max_tile))          # cdiv
    if num_tiles == 1 and N > 512:
        num_tiles = 2                              # >=2 steps: use both v7x TensorCores
    if num_tiles > 1 and num_tiles % 2 == 1:
        num_tiles += 1                             # even step count balances the cores
    tile_n = _round_up(-(-N // num_tiles), 8)      # last tile mostly full
    n_pad = tile_n * num_tiles
    grid = (num_tiles,)

    x_p = jnp.pad(x.astype(st_dt), ((0, n_pad - N), (0, 0)))

    # ---------------- specs ----------------------------------------------------
    # Block last dim == full array dim, so no (8,128) divisibility issue and the
    # DMA for each tile is one contiguous transfer.
    x_spec = pl.BlockSpec((tile_n, in_dim), lambda i: (i, 0))
    param_specs = [pl.BlockSpec(p.shape, lambda i: (0, 0)) for p in flat_params]
    out_spec = pl.BlockSpec((tile_n, out_dim), lambda i: (i, 0))
    # TODO(synk): if vst.msk partial stores ever become the limiter, pack 8 logical
    # rows per 128-lane row instead (measured-only fallback; DMA dominates here).

    # Advisory cost estimate with the real (unpadded) traffic.
    flops = 2 * N * sum(w.shape[0] * w.shape[1] for w in weights)
    bytes_accessed = (N * in_dim * st_itemsize          # x read
                      + N * out_dim * 4                 # out write
                      + param_bytes)                    # params read
    cost = pl.CostEstimate(flops=flops,
                           transcendentals=N if layer_norm else 0,
                           bytes_accessed=bytes_accessed)

    # Explicit VMEM limit (headroom over the estimate, capped below v7x's 64 MiB).
    vmem_est = tile_n * per_row_bytes + param_bytes
    vmem_limit = int(min(max(int(vmem_est * 1.25) + (2 << 20), 16 << 20), 48 << 20))

    kernel = functools.partial(_mlp_kernel, layer_norm, eps, n_linear)

    out = pl.pallas_call(
        kernel,
        out_shape=jax.ShapeDtypeStruct((n_pad, out_dim), jnp.float32),
        grid_spec=pltpu.PrefetchScalarGridSpec(
            num_scalar_prefetch=0,
            grid=grid,
            in_specs=[x_spec] + param_specs,
            out_specs=out_spec,
        ),
        compiler_params=pltpu.CompilerParams(
            dimension_semantics=("parallel",),
            vmem_limit_bytes=vmem_limit),
        cost_estimate=cost,
    )(x_p, *flat_params)

    return out[:N]


def reference_mlp(x, weights, biases, gamma, beta, layer_norm, eps=1e-5):
    h = x
    n_linear = len(weights)
    for l, (w, b) in enumerate(zip(weights, biases)):
        h = h @ w + b
        if l < n_linear - 1:
            h = jnp.maximum(h, 0.0)
    if layer_norm:
        mean = jnp.mean(h, axis=-1, keepdims=True)
        var = jnp.mean((h - mean) ** 2, axis=-1, keepdims=True)
        h = (h - mean) / jnp.sqrt(var + eps)
        h = h * gamma + beta
    return h


def _make_params(key, in_dim, h_dim, out_dim, n_layers):
    dims = [(in_dim, h_dim)] + [(h_dim, h_dim)] * n_layers + [(h_dim, out_dim)]
    weights, biases = [], []
    for di, do in dims:
        key, kw, kb = jax.random.split(key, 3)
        bound = 1.0 / (di ** 0.5)   # PyTorch Linear default init scale
        weights.append(jax.random.uniform(kw, (di, do), jnp.float32, -bound, bound))
        biases.append(jax.random.uniform(kb, (do,), jnp.float32, -bound, bound))
    return key, weights, biases


if __name__ == "__main__":
    # Module hyperparameters (consistent with MLP.__init__):
    in_dim, h_dim, out_dim = 16, 32, 16
    n_layers = 2
    key = jax.random.PRNGKey(0)
    key, weights, biases = _make_params(key, in_dim, h_dim, out_dim, n_layers)
    gamma = jnp.ones((out_dim,), jnp.float32)   # GroupNorm default affine init
    beta = jnp.zeros((out_dim,), jnp.float32)

    ok = True

    # Case 1: layer_norm=True, single-tile grid, N not a multiple of 8.
    key, kx = jax.random.split(key)
    x = jax.random.normal(kx, (200, in_dim), dtype=jnp.float32)
    y = jax.block_until_ready(mlp_pallas(x, weights, biases, gamma, beta, layer_norm=True))
    y_ref = reference_mlp(x, weights, biases, gamma, beta, True)
    ok &= y.shape == y_ref.shape and bool(jnp.allclose(y, y_ref, atol=1e-4, rtol=1e-4))

    # Case 2: layer_norm=True, multi-tile grid (N > 512 -> >=2 parallel steps).
    key, kx = jax.random.split(key)
    x2 = jax.random.normal(kx, (1300, in_dim), dtype=jnp.float32)
    y2 = jax.block_until_ready(mlp_pallas(x2, weights, biases, gamma, beta, layer_norm=True))
    y2_ref = reference_mlp(x2, weights, biases, gamma, beta, True)
    ok &= bool(jnp.allclose(y2, y2_ref, atol=1e-4, rtol=1e-4))

    # Case 3: layer_norm=False path.
    y3 = jax.block_until_ready(mlp_pallas(x, weights, biases, layer_norm=False))
    y3_ref = reference_mlp(x, weights, biases, None, None, False)
    ok &= bool(jnp.allclose(y3, y3_ref, atol=1e-4, rtol=1e-4))

    assert ok, "mismatch vs reference MLP"
    print("KERNEL_OK")
</pallas_src>

<mosaic_0001>
module attributes {stable_mosaic.version = 11 : i64} {
  func.func @_mlp_kernel(%arg0: i32, %arg1: memref<200x16xf32, #tpu.memory_space<vmem>>, %arg2: memref<16x32xf32, #tpu.memory_space<vmem>>, %arg3: memref<1x32xf32, #tpu.memory_space<vmem>>, %arg4: memref<32x32xf32, #tpu.memory_space<vmem>>, %arg5: memref<1x32xf32, #tpu.memory_space<vmem>>, %arg6: memref<32x32xf32, #tpu.memory_space<vmem>>, %arg7: memref<1x32xf32, #tpu.memory_space<vmem>>, %arg8: memref<32x16xf32, #tpu.memory_space<vmem>>, %arg9: memref<1x16xf32, #tpu.memory_space<vmem>>, %arg10: memref<1x16xf32, #tpu.memory_space<vmem>>, %arg11: memref<1x16xf32, #tpu.memory_space<vmem>>, %arg12: memref<200x16xf32, #tpu.memory_space<vmem>>) attributes {dimension_semantics = [#tpu.dimension_semantics<parallel>], iteration_bounds = array<i64: 1>, scalar_prefetch = 0 : i64, scratch_operands = 0 : i64, tpu.core_type = #tpu.core_type<tc>, window_params = [{transform_indices = @transform_0, window_bounds = array<i64: 200, 16>}, {pipeline_mode = #tpu.pipeline_mode<synchronous>, transform_indices = @transform_1, window_bounds = array<i64: 16, 32>}, {pipeline_mode = #tpu.pipeline_mode<synchronous>, transform_indices = @transform_2, window_bounds = array<i64: 1, 32>}, {pipeline_mode = #tpu.pipeline_mode<synchronous>, transform_indices = @transform_3, window_bounds = array<i64: 32, 32>}, {pipeline_mode = #tpu.pipeline_mode<synchronous>, transform_indices = @transform_4, window_bounds = array<i64: 1, 32>}, {pipeline_mode = #tpu.pipeline_mode<synchronous>, transform_indices = @transform_5, window_bounds = array<i64: 32, 32>}, {pipeline_mode = #tpu.pipeline_mode<synchronous>, transform_indices = @transform_6, window_bounds = array<i64: 1, 32>}, {pipeline_mode = #tpu.pipeline_mode<synchronous>, transform_indices = @transform_7, window_bounds = array<i64: 32, 16>}, {pipeline_mode = #tpu.pipeline_mode<synchronous>, transform_indices = @transform_8, window_bounds = array<i64: 1, 16>}, {pipeline_mode = #tpu.pipeline_mode<synchronous>, transform_indices = @transform_9, window_bounds = array<i64: 1, 16>}, {pipeline_mode = #tpu.pipeline_mode<synchronous>, transform_indices = @transform_10, window_bounds = array<i64: 1, 16>}, {transform_indices = @transform_11, window_bounds = array<i64: 200, 16>}]} {
    %c0 = arith.constant 0 : index
    %c0_0 = arith.constant 0 : index
    %0 = vector.load %arg1[%c0, %c0_0] : memref<200x16xf32, #tpu.memory_space<vmem>>, vector<200x16xf32>
    %c0_1 = arith.constant 0 : index
    %c0_2 = arith.constant 0 : index
    %1 = vector.load %arg2[%c0_1, %c0_2] : memref<16x32xf32, #tpu.memory_space<vmem>>, vector<16x32xf32>
    %c0_3 = arith.constant 0 : index
    %c0_4 = arith.constant 0 : index
    %2 = vector.load %arg3[%c0_3, %c0_4] : memref<1x32xf32, #tpu.memory_space<vmem>>, vector<1x32xf32>
    %cst = arith.constant dense<0.000000e+00> : vector<200x32xf32>
    %3 = tpu.matmul %0, %1, %cst {dimension_numbers = #tpu.dot_dimension_numbers<[1], [0], [0], [1], [0, 0, 1, 1], [], []>} : vector<200x16xf32>, vector<16x32xf32>, vector<200x32xf32> -> vector<200x32xf32>
    %4 = vector.broadcast %2 : vector<1x32xf32> to vector<200x32xf32>
    %5 = arith.addf %3, %4 : vector<200x32xf32>
    %cst_5 = arith.constant 0.000000e+00 : f32
    %6 = vector.broadcast %cst_5 : f32 to vector<200x32xf32>
    %7 = arith.maximumf %5, %6 : vector<200x32xf32>
    %c0_6 = arith.constant 0 : index
    %c0_7 = arith.constant 0 : index
    %8 = vector.load %arg4[%c0_6, %c0_7] : memref<32x32xf32, #tpu.memory_space<vmem>>, vector<32x32xf32>
    %c0_8 = arith.constant 0 : index
    %c0_9 = arith.constant 0 : index
    %9 = vector.load %arg5[%c0_8, %c0_9] : memref<1x32xf32, #tpu.memory_space<vmem>>, vector<1x32xf32>
    %cst_10 = arith.constant dense<0.000000e+00> : vector<200x32xf32>
    %10 = tpu.matmul %7, %8, %cst_10 {dimension_numbers = #tpu.dot_dimension_numbers<[1], [0], [0], [1], [0, 0, 1, 1], [], []>} : vector<200x32xf32>, vector<32x32xf32>, vector<200x32xf32> -> vector<200x32xf32>
    %11 = vector.broadcast %9 : vector<1x32xf32> to vector<200x32xf32>
    %12 = arith.addf %10, %11 : vector<200x32xf32>
    %cst_11 = arith.constant 0.000000e+00 : f32
    %13 = vector.broadcast %cst_11 : f32 to vector<200x32xf32>
    %14 = arith.maximumf %12, %13 : vector<200x32xf32>
    %c0_12 = arith.constant 0 : index
    %c0_13 = arith.constant 0 : index
    %15 = vector.load %arg6[%c0_12, %c0_13] : memref<32x32xf32, #tpu.memory_space<vmem>>, vector<32x32xf32>
    %c0_14 = arith.constant 0 : index
    %c0_15 = arith.constant 0 : index
    %16 = vector.load %arg7[%c0_14, %c0_15] : memref<1x32xf32, #tpu.memory_space<vmem>>, vector<1x32xf32>
    %cst_16 = arith.constant dense<0.000000e+00> : vector<200x32xf32>
    %17 = tpu.matmul %14, %15, %cst_16 {dimension_numbers = #tpu.dot_dimension_numbers<[1], [0], [0], [1], [0, 0, 1, 1], [], []>} : vector<200x32xf32>, vector<32x32xf32>, vector<200x32xf32> -> vector<200x32xf32>
    %18 = vector.broadcast %16 : vector<1x32xf32> to vector<200x32xf32>
    %19 = arith.addf %17, %18 : vector<200x32xf32>
    %cst_17 = arith.constant 0.000000e+00 : f32
    %20 = vector.broadcast %cst_17 : f32 to vector<200x32xf32>
    %21 = arith.maximumf %19, %20 : vector<200x32xf32>
    %c0_18 = arith.constant 0 : index
    %c0_19 = arith.constant 0 : index
    %22 = vector.load %arg8[%c0_18, %c0_19] : memref<32x16xf32, #tpu.memory_space<vmem>>, vector<32x16xf32>
    %c0_20 = arith.constant 0 : index
    %c0_21 = arith.constant 0 : index
    %23 = vector.load %arg9[%c0_20, %c0_21] : memref<1x16xf32, #tpu.memory_space<vmem>>, vector<1x16xf32>
    %cst_22 = arith.constant dense<0.000000e+00> : vector<200x16xf32>
    %24 = tpu.matmul %21, %22, %cst_22 {dimension_numbers = #tpu.dot_dimension_numbers<[1], [0], [0], [1], [0, 0, 1, 1], [], []>} : vector<200x32xf32>, vector<32x16xf32>, vector<200x16xf32> -> vector<200x16xf32>
    %25 = vector.broadcast %23 : vector<1x16xf32> to vector<200x16xf32>
    %26 = arith.addf %24, %25 : vector<200x16xf32>
    %c0_23 = arith.constant 0 : index
    %c0_24 = arith.constant 0 : index
    %27 = vector.load %arg10[%c0_23, %c0_24] : memref<1x16xf32, #tpu.memory_space<vmem>>, vector<1x16xf32>
    %c0_25 = arith.constant 0 : index
    %c0_26 = arith.constant 0 : index
    %28 = vector.load %arg11[%c0_25, %c0_26] : memref<1x16xf32, #tpu.memory_space<vmem>>, vector<1x16xf32>
    %cst_27 = arith.constant dense<0.000000e+00> : vector<200xf32>
    %29 = vector.multi_reduction <add>, %26, %cst_27 [1] : vector<200x16xf32> to vector<200xf32>
    %30 = vector.shape_cast %29 : vector<200xf32> to vector<200x1xf32>
    %cst_28 = arith.constant 1.600000e+01 : f32
    %31 = vector.broadcast %cst_28 : f32 to vector<200x1xf32>
    %32 = arith.divf %30, %31 : vector<200x1xf32>
    %33 = vector.broadcast %32 : vector<200x1xf32> to vector<200x16xf32>
    %34 = arith.subf %26, %33 : vector<200x16xf32>
    %35 = arith.mulf %34, %34 : vector<200x16xf32>
    %cst_29 = arith.constant dense<0.000000e+00> : vector<200xf32>
    %36 = vector.multi_reduction <add>, %35, %cst_29 [1] : vector<200x16xf32> to vector<200xf32>
    %37 = vector.shape_cast %36 : vector<200xf32> to vector<200x1xf32>
    %cst_30 = arith.constant 1.600000e+01 : f32
    %38 = vector.broadcast %cst_30 : f32 to vector<200x1xf32>
    %39 = arith.divf %37, %38 : vector<200x1xf32>
    %cst_31 = arith.constant 9.99999974E-6 : f32
    %40 = vector.broadcast %cst_31 : f32 to vector<200x1xf32>
    %41 = arith.addf %39, %40 : vector<200x1xf32>
    %42 = math.rsqrt %41 : vector<200x1xf32>
    %43 = vector.broadcast %42 : vector<200x1xf32> to vector<200x16xf32>
    %44 = arith.mulf %34, %43 : vector<200x16xf32>
    %45 = vector.broadcast %27 : vector<1x16xf32> to vector<200x16xf32>
    %46 = arith.mulf %44, %45 : vector<200x16xf32>
    %47 = vector.broadcast %28 : vector<1x16xf32> to vector<200x16xf32>
    %48 = arith.addf %46, %47 : vector<200x16xf32>
    %c0_32 = arith.constant 0 : index
    %c0_33 = arith.constant 0 : index
    %49 = vector.load %arg12[%c0_32, %c0_33] : memref<200x16xf32, #tpu.memory_space<vmem>>, vector<200x16xf32>
    tpu.vector_store %arg12[%c0_32, %c0_33], %48 {strides = array<i32>} : memref<200x16xf32, #tpu.memory_space<vmem>>, vector<200x16xf32>,
    return
  }
  func.func @transform_0(%arg0: i32) -> (i32, i32) {
    %c0_i32 = arith.constant 0 : i32
    %c0_i32_0 = arith.constant 0 : i32
    return %arg0, %c0_i32 : i32, i32
  }
  func.func @transform_1(%arg0: i32) -> (i32, i32) {
    %c0_i32 = arith.constant 0 : i32
    %c0_i32_0 = arith.constant 0 : i32
    %c0_i32_1 = arith.constant 0 : i32
    return %c0_i32, %c0_i32_0 : i32, i32
  }
  func.func @transform_2(%arg0: i32) -> (i32, i32) {
    %c0_i32 = arith.constant 0 : i32
    %c0_i32_0 = arith.constant 0 : i32
    %c0_i32_1 = arith.constant 0 : i32
    return %c0_i32, %c0_i32_0 : i32, i32
  }
  func.func @transform_3(%arg0: i32) -> (i32, i32) {
    %c0_i32 = arith.constant 0 : i32
    %c0_i32_0 = arith.constant 0 : i32
    %c0_i32_1 = arith.constant 0 : i32
    return %c0_i32, %c0_i32_0 : i32, i32
  }
  func.func @transform_4(%arg0: i32) -> (i32, i32) {
    %c0_i32 = arith.constant 0 : i32
    %c0_i32_0 = arith.constant 0 : i32
    %c0_i32_1 = arith.constant 0 : i32
    return %c0_i32, %c0_i32_0 : i32, i32
  }
  func.func @transform_5(%arg0: i32) -> (i32, i32) {
    %c0_i32 = arith.constant 0 : i32
    %c0_i32_0 = arith.constant 0 : i32
    %c0_i32_1 = arith.constant 0 : i32
    return %c0_i32, %c0_i32_0 : i32, i32
  }
  func.func @transform_6(%arg0: i32) -> (i32, i32) {
    %c0_i32 = arith.constant 0 : i32
    %c0_i32_0 = arith.constant 0 : i32
    %c0_i32_1 = arith.constant 0 : i32
    return %c0_i32, %c0_i32_0 : i32, i32
  }
  func.func @transform_7(%arg0: i32) -> (i32, i32) {
    %c0_i32 = arith.constant 0 : i32
    %c0_i32_0 = arith.constant 0 : i32
    %c0_i32_1 = arith.constant 0 : i32
    return %c0_i32, %c0_i32_0 : i32, i32
  }
  func.func @transform_8(%arg0: i32) -> (i32, i32) {
    %c0_i32 = arith.constant 0 : i32
    %c0_i32_0 = arith.constant 0 : i32
    %c0_i32_1 = arith.constant 0 : i32
    return %c0_i32, %c0_i32_0 : i32, i32
  }
  func.func @transform_9(%arg0: i32) -> (i32, i32) {
    %c0_i32 = arith.constant 0 : i32
    %c0_i32_0 = arith.constant 0 : i32
    %c0_i32_1 = arith.constant 0 : i32
    return %c0_i32, %c0_i32_0 : i32, i32
  }
  func.func @transform_10(%arg0: i32) -> (i32, i32) {
    %c0_i32 = arith.constant 0 : i32
    %c0_i32_0 = arith.constant 0 : i32
    %c0_i32_1 = arith.constant 0 : i32
    return %c0_i32, %c0_i32_0 : i32, i32
  }
  func.func @transform_11(%arg0: i32) -> (i32, i32) {
    %c0_i32 = arith.constant 0 : i32
    %c0_i32_0 = arith.constant 0 : i32
    return %arg0, %c0_i32 : i32, i32
  }
}

</mosaic_0001>

<llo_original>
// kernel: tpu_custom_call.1
$region0: #{tpu_custom_call.1}
  #allocation0 [shape = 'u32[]', space=smem, size = 0x4, offset = 0x4, fixed_abs, tag = 'smem constant byte address 0x4 - core index']
  #allocation1 [shape = 'u32[72,128]{1,0:T(1,128)}', space=vmem, size = 0x9000, scoped, tag = 'internal scratch']
  %s0 = inlined_call_operand.vmem [shape: f32[200,16], index: 0, kind: input, shape index: {}]
  %s1 = inlined_call_operand.vmem [shape: f32[16,32], index: 1, kind: input, shape index: {}]
  %s2 = inlined_call_operand.vmem [shape: f32[1,32], index: 2, kind: input, shape index: {}]
  %s3 = inlined_call_operand.vmem [shape: f32[32,32], index: 3, kind: input, shape index: {}]
  %s4 = inlined_call_operand.vmem [shape: f32[1,32], index: 4, kind: input, shape index: {}]
  %s5 = inlined_call_operand.vmem [shape: f32[32,32], index: 5, kind: input, shape index: {}]
  %s6 = inlined_call_operand.vmem [shape: f32[1,32], index: 6, kind: input, shape index: {}]
  %s7 = inlined_call_operand.vmem [shape: f32[32,16], index: 7, kind: input, shape index: {}]
  %s8 = inlined_call_operand.vmem [shape: f32[1,16], index: 8, kind: input, shape index: {}]
  %s9 = inlined_call_operand.vmem [shape: f32[1,16], index: 9, kind: input, shape index: {}]
  %s10 = inlined_call_operand.vmem [shape: f32[1,16], index: 10, kind: input, shape index: {}]
  %s11 = inlined_call_operand.vmem [shape: f32[200,16], index: 11, kind: output, shape index: {}]
  %s12 = sld [smem:[#allocation0]]
  $region54: #{tpu_custom_call.1} parent=0
    _
  %s14 = ssub.s32 1, %s12
  %s15 = scalar_select 0, %s14, %s12
  // Predicated region
  $region2: #{tpu_custom_call.1} parent=0 // pred_check
    _
  $region3: #{tpu_custom_call.1} parent=0 // pred_check_branch
    %17 = sbr.rel (0) target = $region5
  $region4: #{tpu_custom_call.1} parent=0 // pred_region
    _
  $region5: #{tpu_custom_call.1} parent=0 // pred_fallthru
    _
  // Predicated region
  $region6: #{tpu_custom_call.1} parent=0 // pred_check
    _
  $region7: #{tpu_custom_call.1} parent=0 // pred_check_branch
    %19 = sbr.rel (0) target = $region9
  $region8: #{tpu_custom_call.1} parent=0 // pred_region
    _
  $region9: #{tpu_custom_call.1} parent=0 // pred_fallthru
    _
  // Predicated region
  $region10: #{tpu_custom_call.1} parent=0 // pred_check
    _
  $region11: #{tpu_custom_call.1} parent=0 // pred_check_branch
    %21 = sbr.rel (0) target = $region13
  $region12: #{tpu_custom_call.1} parent=0 // pred_region
    _
  $region13: #{tpu_custom_call.1} parent=0 // pred_fallthru
    _
  // Predicated region
  $region14: #{tpu_custom_call.1} parent=0 // pred_check
    _
  $region15: #{tpu_custom_call.1} parent=0 // pred_check_branch
    %23 = sbr.rel (0) target = $region17
  $region16: #{tpu_custom_call.1} parent=0 // pred_region
    _
  $region17: #{tpu_custom_call.1} parent=0 // pred_fallthru
    _
  // Predicated region
  $region18: #{tpu_custom_call.1} parent=0 // pred_check
    _
  $region19: #{tpu_custom_call.1} parent=0 // pred_check_branch
    %25 = sbr.rel (0) target = $region21
  $region20: #{tpu_custom_call.1} parent=0 // pred_region
    _
  $region21: #{tpu_custom_call.1} parent=0 // pred_fallthru
    _
  // Predicated region
  $region22: #{tpu_custom_call.1} parent=0 // pred_check
    _
  $region23: #{tpu_custom_call.1} parent=0 // pred_check_branch
    %27 = sbr.rel (0) target = $region25
  $region24: #{tpu_custom_call.1} parent=0 // pred_region
    _
  $region25: #{tpu_custom_call.1} parent=0 // pred_fallthru
    _
  // Predicated region
  $region26: #{tpu_custom_call.1} parent=0 // pred_check
    _
  $region27: #{tpu_custom_call.1} parent=0 // pred_check_branch
    %29 = sbr.rel (0) target = $region29
  $region28: #{tpu_custom_call.1} parent=0 // pred_region
    _
  $region29: #{tpu_custom_call.1} parent=0 // pred_fallthru
    _
  // Predicated region
  $region30: #{tpu_custom_call.1} parent=0 // pred_check
    _
  $region31: #{tpu_custom_call.1} parent=0 // pred_check_branch
    %31 = sbr.rel (0) target = $region33
  $region32: #{tpu_custom_call.1} parent=0 // pred_region
    _
  $region33: #{tpu_custom_call.1} parent=0 // pred_fallthru
    _
  // Predicated region
  $region34: #{tpu_custom_call.1} parent=0 // pred_check
    _
  $region35: #{tpu_custom_call.1} parent=0 // pred_check_branch
    %33 = sbr.rel (0) target = $region37
  $region36: #{tpu_custom_call.1} parent=0 // pred_region
    _
  $region37: #{tpu_custom_call.1} parent=0 // pred_fallthru
    _
  // Predicated region
  $region38: #{tpu_custom_call.1} parent=0 // pred_check
    _
  $region39: #{tpu_custom_call.1} parent=0 // pred_check_branch
    %35 = sbr.rel (0) target = $region41
  $region40: #{tpu_custom_call.1} parent=0 // pred_region
    _
  $region41: #{tpu_custom_call.1} parent=0 // pred_fallthru
    _
  // Predicated region
  $region42: #{tpu_custom_call.1} parent=0 // pred_check
    _
  $region43: #{tpu_custom_call.1} parent=0 // pred_check_branch
    %37 = sbr.rel (0) target = $region45
  $region44: #{tpu_custom_call.1} parent=0 // pred_region
    _
  $region45: #{tpu_custom_call.1} parent=0 // pred_fallthru
    _
  %v38 = vld [vmem:[%s0] sm:$0xff]
  %v39 = vld [vmem:[%s0 + $0x8] sm:$0xff]
  %v40 = vld [vmem:[%s0 + $0x10] sm:$0xff]
  %v41 = vld [vmem:[%s0 + $0x18] sm:$0xff]
  %v42 = vld [vmem:[%s0 + $0x20] sm:$0xff]
  %v43 = vld [vmem:[%s0 + $0x28] sm:$0xff]
  %v44 = vld [vmem:[%s0 + $0x30] sm:$0xff]
  %v45 = vld [vmem:[%s0 + $0x38] sm:$0xff]
  %v46 = vld [vmem:[%s0 + $0x40] sm:$0xff]
  %v47 = vld [vmem:[%s0 + $0x48] sm:$0xff]
  %v48 = vld [vmem:[%s0 + $0x50] sm:$0xff]
  %v49 = vld [vmem:[%s0 + $0x58] sm:$0xff]
  %v50 = vld [vmem:[%s0 + $0x60] sm:$0xff]
  %v51 = vld [vmem:[%s0 + $0x68] sm:$0xff]
  %v52 = vld [vmem:[%s0 + $0x70] sm:$0xff]
  %v53 = vld [vmem:[%s0 + $0x78] sm:$0xff]
  %v54 = vld [vmem:[%s0 + $0x80] sm:$0xff]
  %v55 = vld [vmem:[%s0 + $0x88] sm:$0xff]
  %v56 = vld [vmem:[%s0 + $0x90] sm:$0xff]
  %v57 = vld [vmem:[%s0 + $0x98] sm:$0xff]
  %v58 = vld [vmem:[%s0 + $0xa0] sm:$0xff]
  %v59 = vld [vmem:[%s0 + $0xa8] sm:$0xff]
  %v60 = vld [vmem:[%s0 + $0xb0] sm:$0xff]
  %v61 = vld [vmem:[%s0 + $0xb8] sm:$0xff]
  %v62 = vld [vmem:[%s0 + $0xc0] sm:$0xff]
  %v63 = vld [vmem:[%s1] sm:$0xff]
  %v64 = vld [vmem:[%s1 + $0x8] sm:$0xff]
  %v65 = vld [vmem:[%s2] sm:$0x1]
  %v67 = vperm.slane %v65, 0
  %vm69 = vcmask 130048
  %v71 = vsel %vm69, %v38, 0
  %v74 = vsel %vm69, %v39, 0
  %v77 = vsel %vm69, %v40, 0
  %v80 = vsel %vm69, %v41, 0
  %v83 = vsel %vm69, %v42, 0
  %v86 = vsel %vm69, %v43, 0
  %v89 = vsel %vm69, %v44, 0
  %v92 = vsel %vm69, %v45, 0
  %v95 = vsel %vm69, %v46, 0
  %v98 = vsel %vm69, %v47, 0
  %v101 = vsel %vm69, %v48, 0
  %v104 = vsel %vm69, %v49, 0
  %v107 = vsel %vm69, %v50, 0
  %v110 = vsel %vm69, %v51, 0
  %v113 = vsel %vm69, %v52, 0
  %v116 = vsel %vm69, %v53, 0
  %v119 = vsel %vm69, %v54, 0
  %v122 = vsel %vm69, %v55, 0
  %v125 = vsel %vm69, %v56, 0
  %v128 = vsel %vm69, %v57, 0
  %v131 = vsel %vm69, %v58, 0
  %v134 = vsel %vm69, %v59, 0
  %v137 = vsel %vm69, %v60, 0
  %v140 = vsel %vm69, %v61, 0
  %v143 = vsel %vm69, %v62, 0
  %145 = vmatpush.msra.mxu0 0.0
  %146 = vmatpush.msra.mxu0 0.0
  %147 = vmatpush.msra.mxu0 0.0
  %148 = vmatpush.msra.mxu0 0.0
  %149 = vmatpush.msra.mxu0 0.0
  %150 = vmatpush.msra.mxu0 0.0
  %151 = vmatpush.msra.mxu0 0.0
  %152 = vmatpush.msra.mxu0 0.0
  %153 = vmatpush.msra.mxu0 0.0
  %154 = vmatpush.msra.mxu0 0.0
  %155 = vmatpush.msra.mxu0 0.0
  %156 = vmatpush.msra.mxu0 0.0
  %157 = vmatpush.msra.mxu0 0.0
  %158 = vmatpush.msra.mxu0 0.0
  %159 = vmatpush.msra.mxu0 %v64
  %160 = vmatpush.msra.mxu0 %v63
  %161 = vmatmul.f32.gmra.mxu0 %v71
  %v162 = vpop.f32.mrf.mxu0
  %v163 = vadd.f32 %v67, %v162
  %164 = vmatmul.f32.gmra.mxu0 %v74
  %v165 = vpop.f32.mrf.mxu0
  %v166 = vadd.f32 %v67, %v165
  %167 = vmatmul.f32.gmra.mxu0 %v77
  %v168 = vpop.f32.mrf.mxu0
  %v169 = vadd.f32 %v67, %v168
  %170 = vmatmul.f32.gmra.mxu0 %v80
  %v171 = vpop.f32.mrf.mxu0
  %v172 = vadd.f32 %v67, %v171
  %173 = vmatmul.f32.gmra.mxu0 %v83
  %v174 = vpop.f32.mrf.mxu0
  %v175 = vadd.f32 %v67, %v174
  %176 = vmatmul.f32.gmra.mxu0 %v86
  %v177 = vpop.f32.mrf.mxu0
  %v178 = vadd.f32 %v67, %v177
  %179 = vmatmul.f32.gmra.mxu0 %v89
  %v180 = vpop.f32.mrf.mxu0
  %v181 = vadd.f32 %v67, %v180
  %182 = vmatmul.f32.gmra.mxu0 %v92
  %v183 = vpop.f32.mrf.mxu0
  %v184 = vadd.f32 %v67, %v183
  %185 = vmatmul.f32.gmra.mxu0 %v95
  %v186 = vpop.f32.mrf.mxu0
  %v187 = vadd.f32 %v67, %v186
  %188 = vmatmul.f32.gmra.mxu0 %v98
  %v189 = vpop.f32.mrf.mxu0
  %v190 = vadd.f32 %v67, %v189
  %191 = vmatmul.f32.gmra.mxu0 %v101
  %v192 = vpop.f32.mrf.mxu0
  %v193 = vadd.f32 %v67, %v192
  %194 = vmatmul.f32.gmra.mxu0 %v104
  %v195 = vpop.f32.mrf.mxu0
  %v196 = vadd.f32 %v67, %v195
  %197 = vmatmul.f32.gmra.mxu0 %v107
  %v198 = vpop.f32.mrf.mxu0
  %v199 = vadd.f32 %v67, %v198
  %200 = vmatmul.f32.gmra.mxu0 %v110
  %v201 = vpop.f32.mrf.mxu0
  %v202 = vadd.f32 %v67, %v201
  %203 = vmatmul.f32.gmra.mxu0 %v113
  %v204 = vpop.f32.mrf.mxu0
  %v205 = vadd.f32 %v67, %v204
  %206 = vmatmul.f32.gmra.mxu0 %v116
  %v207 = vpop.f32.mrf.mxu0
  %v208 = vadd.f32 %v67, %v207
  %209 = vmatmul.f32.gmra.mxu0 %v119
  %v210 = vpop.f32.mrf.mxu0
  %v211 = vadd.f32 %v67, %v210
  %212 = vmatmul.f32.gmra.mxu0 %v122
  %v213 = vpop.f32.mrf.mxu0
  %v214 = vadd.f32 %v67, %v213
  %215 = vmatmul.f32.gmra.mxu0 %v125
  %v216 = vpop.f32.mrf.mxu0
  %v217 = vadd.f32 %v67, %v216
  %218 = vmatmul.f32.gmra.mxu0 %v128
  %v219 = vpop.f32.mrf.mxu0
  %v220 = vadd.f32 %v67, %v219
  %221 = vmatmul.f32.gmra.mxu0 %v131
  %v222 = vpop.f32.mrf.mxu0
  %v223 = vadd.f32 %v67, %v222
  %224 = vmatmul.f32.gmra.mxu0 %v134
  %v225 = vpop.f32.mrf.mxu0
  %v226 = vadd.f32 %v67, %v225
  %227 = vmatmul.f32.gmra.mxu0 %v137
  %v228 = vpop.f32.mrf.mxu0
  %v229 = vadd.f32 %v67, %v228
  %230 = vmatmul.f32.gmra.mxu0 %v140
  %v231 = vpop.f32.mrf.mxu0
  %v232 = vadd.f32 %v67, %v231
  %233 = vmatmul.f32.gmra.mxu0 %v143
  %v234 = vpop.f32.mrf.mxu0
  %v235 = vadd.f32 %v67, %v234
  %236 = vdwg.mxu0
  %v237 = vmax.f32 %v163, 0.0
  %v238 = vmax.f32 %v166, 0.0
  %v239 = vmax.f32 %v169, 0.0
  %v240 = vmax.f32 %v172, 0.0
  %v241 = vmax.f32 %v175, 0.0
  %v242 = vmax.f32 %v178, 0.0
  %v243 = vmax.f32 %v181, 0.0
  %v244 = vmax.f32 %v184, 0.0
  %v245 = vmax.f32 %v187, 0.0
  %v246 = vmax.f32 %v190, 0.0
  %v247 = vmax.f32 %v193, 0.0
  %v248 = vmax.f32 %v196, 0.0
  %v249 = vmax.f32 %v199, 0.0
  %v250 = vmax.f32 %v202, 0.0
  %v251 = vmax.f32 %v205, 0.0
  %v252 = vmax.f32 %v208, 0.0
  %v253 = vmax.f32 %v211, 0.0
  %v254 = vmax.f32 %v214, 0.0
  %v255 = vmax.f32 %v217, 0.0
  %v256 = vmax.f32 %v220, 0.0
  %v257 = vmax.f32 %v223, 0.0
  %v258 = vmax.f32 %v226, 0.0
  %v259 = vmax.f32 %v229, 0.0
  %v260 = vmax.f32 %v232, 0.0
  %v261 = vmax.f32 %v235, 0.0
  %v262 = vld [vmem:[%s3] sm:$0xff]
  %v263 = vld [vmem:[%s3 + $0x8] sm:$0xff]
  %v264 = vld [vmem:[%s3 + $0x10] sm:$0xff]
  %v265 = vld [vmem:[%s3 + $0x18] sm:$0xff]
  %v266 = vld [vmem:[%s4] sm:$0x1]
  %v268 = vperm.slane %v266, 0
  %vm270 = vcmask 261120
  %v272 = vsel %vm270, %v237, 0
  %v275 = vsel %vm270, %v238, 0
  %v278 = vsel %vm270, %v239, 0
  %v281 = vsel %vm270, %v240, 0
  %v284 = vsel %vm270, %v241, 0
  %v287 = vsel %vm270, %v242, 0
  %v290 = vsel %vm270, %v243, 0
  %v293 = vsel %vm270, %v244, 0
  %v296 = vsel %vm270, %v245, 0
  %v299 = vsel %vm270, %v246, 0
  %v302 = vsel %vm270, %v247, 0
  %v305 = vsel %vm270, %v248, 0
  %v308 = vsel %vm270, %v249, 0
  %v311 = vsel %vm270, %v250, 0
  %v314 = vsel %vm270, %v251, 0
  %v317 = vsel %vm270, %v252, 0
  %v320 = vsel %vm270, %v253, 0
  %v323 = vsel %vm270, %v254, 0
  %v326 = vsel %vm270, %v255, 0
  %v329 = vsel %vm270, %v256, 0
  %v332 = vsel %vm270, %v257, 0
  %v335 = vsel %vm270, %v258, 0
  %v338 = vsel %vm270, %v259, 0
  %v341 = vsel %vm270, %v260, 0
  %v344 = vsel %vm270, %v261, 0
  %346 = vmatpush.msra.mxu0 0.0
  %347 = vmatpush.msra.mxu0 0.0
  %348 = vmatpush.msra.mxu0 0.0
  %349 = vmatpush.msra.mxu0 0.0
  %350 = vmatpush.msra.mxu0 0.0
  %351 = vmatpush.msra.mxu0 0.0
  %352 = vmatpush.msra.mxu0 0.0
  %353 = vmatpush.msra.mxu0 0.0
  %354 = vmatpush.msra.mxu0 0.0
  %355 = vmatpush.msra.mxu0 0.0
  %356 = vmatpush.msra.mxu0 0.0
  %357 = vmatpush.msra.mxu0 0.0
  %358 = vmatpush.msra.mxu0 %v265
  %359 = vmatpush.msra.mxu0 %v264
  %360 = vmatpush.msra.mxu0 %v263
  %361 = vmatpush.msra.mxu0 %v262
  %362 = vmatmul.f32.gmra.mxu0 %v272
  %v363 = vpop.f32.mrf.mxu0
  %v364 = vadd.f32 %v268, %v363
  %365 = vmatmul.f32.gmra.mxu0 %v275
  %v366 = vpop.f32.mrf.mxu0
  %v367 = vadd.f32 %v268, %v366
  %368 = vmatmul.f32.gmra.mxu0 %v278
  %v369 = vpop.f32.mrf.mxu0
  %v370 = vadd.f32 %v268, %v369
  %371 = vmatmul.f32.gmra.mxu0 %v281
  %v372 = vpop.f32.mrf.mxu0
  %v373 = vadd.f32 %v268, %v372
  %374 = vmatmul.f32.gmra.mxu0 %v284
  %v375 = vpop.f32.mrf.mxu0
  %v376 = vadd.f32 %v268, %v375
  %377 = vmatmul.f32.gmra.mxu0 %v287
  %v378 = vpop.f32.mrf.mxu0
  %v379 = vadd.f32 %v268, %v378
  %380 = vmatmul.f32.gmra.mxu0 %v290
  %v381 = vpop.f32.mrf.mxu0
  %v382 = vadd.f32 %v268, %v381
  %383 = vmatmul.f32.gmra.mxu0 %v293
  %v384 = vpop.f32.mrf.mxu0
  %v385 = vadd.f32 %v268, %v384
  %386 = vmatmul.f32.gmra.mxu0 %v296
  %v387 = vpop.f32.mrf.mxu0
  %v388 = vadd.f32 %v268, %v387
  %389 = vmatmul.f32.gmra.mxu0 %v299
  %v390 = vpop.f32.mrf.mxu0
  %v391 = vadd.f32 %v268, %v390
  %392 = vmatmul.f32.gmra.mxu0 %v302
  %v393 = vpop.f32.mrf.mxu0
  %v394 = vadd.f32 %v268, %v393
  %395 = vmatmul.f32.gmra.mxu0 %v305
  %v396 = vpop.f32.mrf.mxu0
  %v397 = vadd.f32 %v268, %v396
  %398 = vmatmul.f32.gmra.mxu0 %v308
  %v399 = vpop.f32.mrf.mxu0
  %v400 = vadd.f32 %v268, %v399
  %401 = vmatmul.f32.gmra.mxu0 %v311
  %v402 = vpop.f32.mrf.mxu0
  %v403 = vadd.f32 %v268, %v402
  %404 = vmatmul.f32.gmra.mxu0 %v314
  %v405 = vpop.f32.mrf.mxu0
  %v406 = vadd.f32 %v268, %v405
  %407 = vmatmul.f32.gmra.mxu0 %v317
  %v408 = vpop.f32.mrf.mxu0
  %v409 = vadd.f32 %v268, %v408
  %410 = vmatmul.f32.gmra.mxu0 %v320
  %v411 = vpop.f32.mrf.mxu0
  %v412 = vadd.f32 %v268, %v411
  %413 = vmatmul.f32.gmra.mxu0 %v323
  %v414 = vpop.f32.mrf.mxu0
  %v415 = vadd.f32 %v268, %v414
  %416 = vmatmul.f32.gmra.mxu0 %v326
  %v417 = vpop.f32.mrf.mxu0
  %v418 = vadd.f32 %v268, %v417
  %419 = vmatmul.f32.gmra.mxu0 %v329
  %v420 = vpop.f32.mrf.mxu0
  %v421 = vadd.f32 %v268, %v420
  %422 = vmatmul.f32.gmra.mxu0 %v332
  %v423 = vpop.f32.mrf.mxu0
  %v424 = vadd.f32 %v268, %v423
  %425 = vmatmul.f32.gmra.mxu0 %v335
  %v426 = vpop.f32.mrf.mxu0
  %v427 = vadd.f32 %v268, %v426
  %428 = vmatmul.f32.gmra.mxu0 %v338
  %v429 = vpop.f32.mrf.mxu0
  %v430 = vadd.f32 %v268, %v429
  %431 = vmatmul.f32.gmra.mxu0 %v341
  %v432 = vpop.f32.mrf.mxu0
  %v433 = vadd.f32 %v268, %v432
  %434 = vmatmul.f32.gmra.mxu0 %v344
  %v435 = vpop.f32.mrf.mxu0
  %v436 = vadd.f32 %v268, %v435
  %437 = vdwg.mxu0
  %v438 = vmax.f32 %v364, 0.0
  %v439 = vmax.f32 %v367, 0.0
  %v440 = vmax.f32 %v370, 0.0
  %v441 = vmax.f32 %v373, 0.0
  %v442 = vmax.f32 %v376, 0.0
  %v443 = vmax.f32 %v379, 0.0
  %v444 = vmax.f32 %v382, 0.0
  %v445 = vmax.f32 %v385, 0.0
  %v446 = vmax.f32 %v388, 0.0
  %v447 = vmax.f32 %v391, 0.0
  %v448 = vmax.f32 %v394, 0.0
  %v449 = vmax.f32 %v397, 0.0
  %v450 = vmax.f32 %v400, 0.0
  %v451 = vmax.f32 %v403, 0.0
  %v452 = vmax.f32 %v406, 0.0
  %v453 = vmax.f32 %v409, 0.0
  %v454 = vmax.f32 %v412, 0.0
  %v455 = vmax.f32 %v415, 0.0
  %v456 = vmax.f32 %v418, 0.0
  %v457 = vmax.f32 %v421, 0.0
  %v458 = vmax.f32 %v424, 0.0
  %v459 = vmax.f32 %v427, 0.0
  %v460 = vmax.f32 %v430, 0.0
  %v461 = vmax.f32 %v433, 0.0
  %v462 = vmax.f32 %v436, 0.0
  %v463 = vld [vmem:[%s5] sm:$0xff]
  %v464 = vld [vmem:[%s5 + $0x8] sm:$0xff]
  %v465 = vld [vmem:[%s5 + $0x10] sm:$0xff]
  %v466 = vld [vmem:[%s5 + $0x18] sm:$0xff]
  %v467 = vld [vmem:[%s6] sm:$0x1]
  %v469 = vperm.slane %v467, 0
  %v472 = vsel %vm270, %v438, 0
  %v475 = vsel %vm270, %v439, 0
  %v478 = vsel %vm270, %v440, 0
  %v481 = vsel %vm270, %v441, 0
  %v484 = vsel %vm270, %v442, 0
  %v487 = vsel %vm270, %v443, 0
  %v490 = vsel %vm270, %v444, 0
  %v493 = vsel %vm270, %v445, 0
  %v496 = vsel %vm270, %v446, 0
  %v499 = vsel %vm270, %v447, 0
  %v502 = vsel %vm270, %v448, 0
  %v505 = vsel %vm270, %v449, 0
  %v508 = vsel %vm270, %v450, 0
  %v511 = vsel %vm270, %v451, 0
  %v514 = vsel %vm270, %v452, 0
  %v517 = vsel %vm270, %v453, 0
  %v520 = vsel %vm270, %v454, 0
  %v523 = vsel %vm270, %v455, 0
  %v526 = vsel %vm270, %v456, 0
  %v529 = vsel %vm270, %v457, 0
  %v532 = vsel %vm270, %v458, 0
  %v535 = vsel %vm270, %v459, 0
  %v538 = vsel %vm270, %v460, 0
  %v541 = vsel %vm270, %v461, 0
  %v544 = vsel %vm270, %v462, 0
  %546 = vmatpush.msra.mxu0 0.0
  %547 = vmatpush.msra.mxu0 0.0
  %548 = vmatpush.msra.mxu0 0.0
  %549 = vmatpush.msra.mxu0 0.0
  %550 = vmatpush.msra.mxu0 0.0
  %551 = vmatpush.msra.mxu0 0.0
  %552 = vmatpush.msra.mxu0 0.0
  %553 = vmatpush.msra.mxu0 0.0
  %554 = vmatpush.msra.mxu0 0.0
  %555 = vmatpush.msra.mxu0 0.0
  %556 = vmatpush.msra.mxu0 0.0
  %557 = vmatpush.msra.mxu0 0.0
  %558 = vmatpush.msra.mxu0 %v466
  %559 = vmatpush.msra.mxu0 %v465
  %560 = vmatpush.msra.mxu0 %v464
  %561 = vmatpush.msra.mxu0 %v463
  %562 = vmatmul.f32.gmra.mxu0 %v472
  %v563 = vpop.f32.mrf.mxu0
  %v564 = vadd.f32 %v469, %v563
  %565 = vmatmul.f32.gmra.mxu0 %v475
  %v566 = vpop.f32.mrf.mxu0
  %v567 = vadd.f32 %v469, %v566
  %568 = vmatmul.f32.gmra.mxu0 %v478
  %v569 = vpop.f32.mrf.mxu0
  %v570 = vadd.f32 %v469, %v569
  %571 = vmatmul.f32.gmra.mxu0 %v481
  %v572 = vpop.f32.mrf.mxu0
  %v573 = vadd.f32 %v469, %v572
  %574 = vmatmul.f32.gmra.mxu0 %v484
  %v575 = vpop.f32.mrf.mxu0
  %v576 = vadd.f32 %v469, %v575
  %577 = vmatmul.f32.gmra.mxu0 %v487
  %v578 = vpop.f32.mrf.mxu0
  %v579 = vadd.f32 %v469, %v578
  %580 = vmatmul.f32.gmra.mxu0 %v490
  %v581 = vpop.f32.mrf.mxu0
  %v582 = vadd.f32 %v469, %v581
  %583 = vmatmul.f32.gmra.mxu0 %v493
  %v584 = vpop.f32.mrf.mxu0
  %v585 = vadd.f32 %v469, %v584
  %586 = vmatmul.f32.gmra.mxu0 %v496
  %v587 = vpop.f32.mrf.mxu0
  %v588 = vadd.f32 %v469, %v587
  %589 = vmatmul.f32.gmra.mxu0 %v499
  %v590 = vpop.f32.mrf.mxu0
  %v591 = vadd.f32 %v469, %v590
  %592 = vmatmul.f32.gmra.mxu0 %v502
  %v593 = vpop.f32.mrf.mxu0
  %v594 = vadd.f32 %v469, %v593
  %595 = vmatmul.f32.gmra.mxu0 %v505
  %v596 = vpop.f32.mrf.mxu0
  %v597 = vadd.f32 %v469, %v596
  %598 = vmatmul.f32.gmra.mxu0 %v508
  %v599 = vpop.f32.mrf.mxu0
  %v600 = vadd.f32 %v469, %v599
  %601 = vmatmul.f32.gmra.mxu0 %v511
  %v602 = vpop.f32.mrf.mxu0
  %v603 = vadd.f32 %v469, %v602
  %604 = vmatmul.f32.gmra.mxu0 %v514
  %v605 = vpop.f32.mrf.mxu0
  %v606 = vadd.f32 %v469, %v605
  %607 = vmatmul.f32.gmra.mxu0 %v517
  %v608 = vpop.f32.mrf.mxu0
  %v609 = vadd.f32 %v469, %v608
  %610 = vmatmul.f32.gmra.mxu0 %v520
  %v611 = vpop.f32.mrf.mxu0
  %v612 = vadd.f32 %v469, %v611
  %613 = vmatmul.f32.gmra.mxu0 %v523
  %v614 = vpop.f32.mrf.mxu0
  %v615 = vadd.f32 %v469, %v614
  %616 = vmatmul.f32.gmra.mxu0 %v526
  %v617 = vpop.f32.mrf.mxu0
  %v618 = vadd.f32 %v469, %v617
  %619 = vmatmul.f32.gmra.mxu0 %v529
  %v620 = vpop.f32.mrf.mxu0
  %v621 = vadd.f32 %v469, %v620
  %622 = vmatmul.f32.gmra.mxu0 %v532
  %v623 = vpop.f32.mrf.mxu0
  %v624 = vadd.f32 %v469, %v623
  %625 = vmatmul.f32.gmra.mxu0 %v535
  %v626 = vpop.f32.mrf.mxu0
  %v627 = vadd.f32 %v469, %v626
  %628 = vmatmul.f32.gmra.mxu0 %v538
  %v629 = vpop.f32.mrf.mxu0
  %v630 = vadd.f32 %v469, %v629
  %631 = vmatmul.f32.gmra.mxu0 %v541
  %v632 = vpop.f32.mrf.mxu0
  %v633 = vadd.f32 %v469, %v632
  %634 = vmatmul.f32.gmra.mxu0 %v544
  %v635 = vpop.f32.mrf.mxu0
  %v636 = vadd.f32 %v469, %v635
  %637 = vdwg.mxu0
  %v638 = vmax.f32 %v564, 0.0
  %v639 = vmax.f32 %v567, 0.0
  %v640 = vmax.f32 %v570, 0.0
  %v641 = vmax.f32 %v573, 0.0
  %v642 = vmax.f32 %v576, 0.0
  %v643 = vmax.f32 %v579, 0.0
  %v644 = vmax.f32 %v582, 0.0
  %v645 = vmax.f32 %v585, 0.0
  %v646 = vmax.f32 %v588, 0.0
  %v647 = vmax.f32 %v591, 0.0
  %v648 = vmax.f32 %v594, 0.0
  %v649 = vmax.f32 %v597, 0.0
  %v650 = vmax.f32 %v600, 0.0
  %v651 = vmax.f32 %v603, 0.0
  %v652 = vmax.f32 %v606, 0.0
  %v653 = vmax.f32 %v609, 0.0
  %v654 = vmax.f32 %v612, 0.0
  %v655 = vmax.f32 %v615, 0.0
  %v656 = vmax.f32 %v618, 0.0
  %v657 = vmax.f32 %v621, 0.0
  %v658 = vmax.f32 %v624, 0.0
  %v659 = vmax.f32 %v627, 0.0
  %v660 = vmax.f32 %v630, 0.0
  %v661 = vmax.f32 %v633, 0.0
  %v662 = vmax.f32 %v636, 0.0
  %v663 = vld [vmem:[%s7] sm:$0xff]
  %v664 = vld [vmem:[%s7 + $0x8] sm:$0xff]
  %v665 = vld [vmem:[%s7 + $0x10] sm:$0xff]
  %v666 = vld [vmem:[%s7 + $0x18] sm:$0xff]
  %v667 = vld [vmem:[%s8] sm:$0x1]
  %v669 = vperm.slane %v667, 0
  %v672 = vsel %vm270, %v638, 0
  %v675 = vsel %vm270, %v639, 0
  %v678 = vsel %vm270, %v640, 0
  %v681 = vsel %vm270, %v641, 0
  %v684 = vsel %vm270, %v642, 0
  %v687 = vsel %vm270, %v643, 0
  %v690 = vsel %vm270, %v644, 0
  %v693 = vsel %vm270, %v645, 0
  %v696 = vsel %vm270, %v646, 0
  %v699 = vsel %vm270, %v647, 0
  %v702 = vsel %vm270, %v648, 0
  %v705 = vsel %vm270, %v649, 0
  %v708 = vsel %vm270, %v650, 0
  %v711 = vsel %vm270, %v651, 0
  %v714 = vsel %vm270, %v652, 0
  %v717 = vsel %vm270, %v653, 0
  %v720 = vsel %vm270, %v654, 0
  %v723 = vsel %vm270, %v655, 0
  %v726 = vsel %vm270, %v656, 0
  %v729 = vsel %vm270, %v657, 0
  %v732 = vsel %vm270, %v658, 0
  %v735 = vsel %vm270, %v659, 0
  %v738 = vsel %vm270, %v660, 0
  %v741 = vsel %vm270, %v661, 0
  %v744 = vsel %vm270, %v662, 0
  %746 = vmatpush.msra.mxu0 0.0
  %747 = vmatpush.msra.mxu0 0.0
  %748 = vmatpush.msra.mxu0 0.0
  %749 = vmatpush.msra.mxu0 0.0
  %750 = vmatpush.msra.mxu0 0.0
  %751 = vmatpush.msra.mxu0 0.0
  %752 = vmatpush.msra.mxu0 0.0
  %753 = vmatpush.msra.mxu0 0.0
  %754 = vmatpush.msra.mxu0 0.0
  %755 = vmatpush.msra.mxu0 0.0
  %756 = vmatpush.msra.mxu0 0.0
  %757 = vmatpush.msra.mxu0 0.0
  %758 = vmatpush.msra.mxu0 %v666
  %759 = vmatpush.msra.mxu0 %v665
  %760 = vmatpush.msra.mxu0 %v664
  %761 = vmatpush.msra.mxu0 %v663
  %762 = vmatmul.f32.gmra.mxu0 %v672
  %v763 = vpop.f32.mrf.mxu0
  %v764 = vadd.f32 %v669, %v763
  %765 = vmatmul.f32.gmra.mxu0 %v675
  %v766 = vpop.f32.mrf.mxu0
  %v767 = vadd.f32 %v669, %v766
  %768 = vmatmul.f32.gmra.mxu0 %v678
  %v769 = vpop.f32.mrf.mxu0
  %v770 = vadd.f32 %v669, %v769
  %771 = vmatmul.f32.gmra.mxu0 %v681
  %v772 = vpop.f32.mrf.mxu0
  %v773 = vadd.f32 %v669, %v772
  %774 = vmatmul.f32.gmra.mxu0 %v684
  %v775 = vpop.f32.mrf.mxu0
  %v776 = vadd.f32 %v669, %v775
  %777 = vmatmul.f32.gmra.mxu0 %v687
  %v778 = vpop.f32.mrf.mxu0
  %v779 = vadd.f32 %v669, %v778
  %780 = vmatmul.f32.gmra.mxu0 %v690
  %v781 = vpop.f32.mrf.mxu0
  %v782 = vadd.f32 %v669, %v781
  %783 = vmatmul.f32.gmra.mxu0 %v693
  %v784 = vpop.f32.mrf.mxu0
  %v785 = vadd.f32 %v669, %v784
  %786 = vmatmul.f32.gmra.mxu0 %v696
  %v787 = vpop.f32.mrf.mxu0
  %v788 = vadd.f32 %v669, %v787
  %789 = vmatmul.f32.gmra.mxu0 %v699
  %v790 = vpop.f32.mrf.mxu0
  %v791 = vadd.f32 %v669, %v790
  %792 = vmatmul.f32.gmra.mxu0 %v702
  %v793 = vpop.f32.mrf.mxu0
  %v794 = vadd.f32 %v669, %v793
  %795 = vmatmul.f32.gmra.mxu0 %v705
  %v796 = vpop.f32.mrf.mxu0
  %v797 = vadd.f32 %v669, %v796
  %798 = vmatmul.f32.gmra.mxu0 %v708
  %v799 = vpop.f32.mrf.mxu0
  %v800 = vadd.f32 %v669, %v799
  %801 = vmatmul.f32.gmra.mxu0 %v711
  %v802 = vpop.f32.mrf.mxu0
  %v803 = vadd.f32 %v669, %v802
  %804 = vmatmul.f32.gmra.mxu0 %v714
  %v805 = vpop.f32.mrf.mxu0
  %v806 = vadd.f32 %v669, %v805
  %807 = vmatmul.f32.gmra.mxu0 %v717
  %v808 = vpop.f32.mrf.mxu0
  %v809 = vadd.f32 %v669, %v808
  %810 = vmatmul.f32.gmra.mxu0 %v720
  %v811 = vpop.f32.mrf.mxu0
  %v812 = vadd.f32 %v669, %v811
  %813 = vmatmul.f32.gmra.mxu0 %v723
  %v814 = vpop.f32.mrf.mxu0
  %v815 = vadd.f32 %v669, %v814
  %816 = vmatmul.f32.gmra.mxu0 %v726
  %v817 = vpop.f32.mrf.mxu0
  %v818 = vadd.f32 %v669, %v817
  %819 = vmatmul.f32.gmra.mxu0 %v729
  %v820 = vpop.f32.mrf.mxu0
  %v821 = vadd.f32 %v669, %v820
  %822 = vmatmul.f32.gmra.mxu0 %v732
  %v823 = vpop.f32.mrf.mxu0
  %v824 = vadd.f32 %v669, %v823
  %825 = vmatmul.f32.gmra.mxu0 %v735
  %v826 = vpop.f32.mrf.mxu0
  %v827 = vadd.f32 %v669, %v826
  %828 = vmatmul.f32.gmra.mxu0 %v738
  %v829 = vpop.f32.mrf.mxu0
  %v830 = vadd.f32 %v669, %v829
  %831 = vmatmul.f32.gmra.mxu0 %v741
  %v832 = vpop.f32.mrf.mxu0
  %v833 = vadd.f32 %v669, %v832
  %834 = vmatmul.f32.gmra.mxu0 %v744
  %v835 = vpop.f32.mrf.mxu0
  %v836 = vadd.f32 %v669, %v835
  %837 = vdwg.mxu0
  %v838 = vld [vmem:[%s9] sm:$0x1]
  %v839 = vld [vmem:[%s10] sm:$0x1]
  %v840 = vsel %vm69, %v764, 0.0
  %841 = vadd.xlane.f32.xlu0 %v840
  %v842 = vpop.xlane.xlu0 %841
  %v843 = vsel %vm69, %v767, 0.0
  %844 = vadd.xlane.f32.xlu0 %v843
  %v845 = vpop.xlane.xlu0 %844
  %v846 = vsel %vm69, %v770, 0.0
  %847 = vadd.xlane.f32.xlu0 %v846
  %v848 = vpop.xlane.xlu0 %847
  %v849 = vsel %vm69, %v773, 0.0
  %850 = vadd.xlane.f32.xlu0 %v849
  %v851 = vpop.xlane.xlu0 %850
  %v852 = vsel %vm69, %v776, 0.0
  %853 = vadd.xlane.f32.xlu0 %v852
  %v854 = vpop.xlane.xlu0 %853
  %v855 = vsel %vm69, %v779, 0.0
  %856 = vadd.xlane.f32.xlu0 %v855
  %v857 = vpop.xlane.xlu0 %856
  %v858 = vsel %vm69, %v782, 0.0
  %859 = vadd.xlane.f32.xlu0 %v858
  %v860 = vpop.xlane.xlu0 %859
  %v861 = vsel %vm69, %v785, 0.0
  %862 = vadd.xlane.f32.xlu0 %v861
  %v863 = vpop.xlane.xlu0 %862
  %v864 = vsel %vm69, %v788, 0.0
  %865 = vadd.xlane.f32.xlu0 %v864
  %v866 = vpop.xlane.xlu0 %865
  %v867 = vsel %vm69, %v791, 0.0
  %868 = vadd.xlane.f32.xlu0 %v867
  %v869 = vpop.xlane.xlu0 %868
  %v870 = vsel %vm69, %v794, 0.0
  %871 = vadd.xlane.f32.xlu0 %v870
  %v872 = vpop.xlane.xlu0 %871
  %v873 = vsel %vm69, %v797, 0.0
  %874 = vadd.xlane.f32.xlu0 %v873
  %v875 = vpop.xlane.xlu0 %874
  %v876 = vsel %vm69, %v800, 0.0
  %877 = vadd.xlane.f32.xlu0 %v876
  %v878 = vpop.xlane.xlu0 %877
  %v879 = vsel %vm69, %v803, 0.0
  %880 = vadd.xlane.f32.xlu0 %v879
  %v881 = vpop.xlane.xlu0 %880
  %v882 = vsel %vm69, %v806, 0.0
  %883 = vadd.xlane.f32.xlu0 %v882
  %v884 = vpop.xlane.xlu0 %883
  %v885 = vsel %vm69, %v809, 0.0
  %886 = vadd.xlane.f32.xlu0 %v885
  %v887 = vpop.xlane.xlu0 %886
  %v888 = vsel %vm69, %v812, 0.0
  %889 = vadd.xlane.f32.xlu0 %v888
  %v890 = vpop.xlane.xlu0 %889
  %v891 = vsel %vm69, %v815, 0.0
  %892 = vadd.xlane.f32.xlu0 %v891
  %v893 = vpop.xlane.xlu0 %892
  %v894 = vsel %vm69, %v818, 0.0
  %895 = vadd.xlane.f32.xlu0 %v894
  %v896 = vpop.xlane.xlu0 %895
  %v897 = vsel %vm69, %v821, 0.0
  %898 = vadd.xlane.f32.xlu0 %v897
  %v899 = vpop.xlane.xlu0 %898
  %v900 = vsel %vm69, %v824, 0.0
  %901 = vadd.xlane.f32.xlu0 %v900
  %v902 = vpop.xlane.xlu0 %901
  %v903 = vsel %vm69, %v827, 0.0
  %904 = vadd.xlane.f32.xlu0 %v903
  %v905 = vpop.xlane.xlu0 %904
  %v906 = vsel %vm69, %v830, 0.0
  %907 = vadd.xlane.f32.xlu0 %v906
  %v908 = vpop.xlane.xlu0 %907
  %v909 = vsel %vm69, %v833, 0.0
  %910 = vadd.xlane.f32.xlu0 %v909
  %v911 = vpop.xlane.xlu0 %910
  %v912 = vsel %vm69, %v836, 0.0
  %913 = vadd.xlane.f32.xlu0 %v912
  %v914 = vpop.xlane.xlu0 %913
  %v915 = vrcp.pop 16.0
  %v916 = vmul.f32 16.0, %v915
  %v917 = vsub.f32 1.0, %v916
  %v918 = vmul.f32 %v915, %v917
  %v919 = vadd.f32 %v915, %v918
  %vm920 = vweird.f32 %v915
  %v921 = vsel %vm920, %v915, %v919
  %v922 = vmul.f32 %v842, %v921
  %v923 = vmul.f32 %v845, %v921
  %v924 = vmul.f32 %v848, %v921
  %v925 = vmul.f32 %v851, %v921
  %v926 = vmul.f32 %v854, %v921
  %v927 = vmul.f32 %v857, %v921
  %v928 = vmul.f32 %v860, %v921
  %v929 = vmul.f32 %v863, %v921
  %v930 = vmul.f32 %v866, %v921
  %v931 = vmul.f32 %v869, %v921
  %v932 = vmul.f32 %v872, %v921
  %v933 = vmul.f32 %v875, %v921
  %v934 = vmul.f32 %v878, %v921
  %v935 = vmul.f32 %v881, %v921
  %v936 = vmul.f32 %v884, %v921
  %v937 = vmul.f32 %v887, %v921
  %v938 = vmul.f32 %v890, %v921
  %v939 = vmul.f32 %v893, %v921
  %v940 = vmul.f32 %v896, %v921
  %v941 = vmul.f32 %v899, %v921
  %v942 = vmul.f32 %v902, %v921
  %v943 = vmul.f32 %v905, %v921
  %v944 = vmul.f32 %v908, %v921
  %v945 = vmul.f32 %v911, %v921
  %v946 = vmul.f32 %v914, %v921
  %v947 = vsub.f32 %v764, %v922
  %v948 = vsub.f32 %v767, %v923
  %v949 = vsub.f32 %v770, %v924
  %v950 = vsub.f32 %v773, %v925
  %v951 = vsub.f32 %v776, %v926
  %v952 = vsub.f32 %v779, %v927
  %v953 = vsub.f32 %v782, %v928
  %v954 = vsub.f32 %v785, %v929
  %v955 = vsub.f32 %v788, %v930
  %v956 = vsub.f32 %v791, %v931
  %v957 = vsub.f32 %v794, %v932
  %v958 = vsub.f32 %v797, %v933
  %v959 = vsub.f32 %v800, %v934
  %v960 = vsub.f32 %v803, %v935
  %v961 = vsub.f32 %v806, %v936
  %v962 = vsub.f32 %v809, %v937
  %v963 = vsub.f32 %v812, %v938
  %v964 = vsub.f32 %v815, %v939
  %v965 = vsub.f32 %v818, %v940
  %v966 = vsub.f32 %v821, %v941
  %v967 = vsub.f32 %v824, %v942
  %v968 = vsub.f32 %v827, %v943
  %v969 = vsub.f32 %v830, %v944
  %v970 = vsub.f32 %v833, %v945
  %v971 = vsub.f32 %v836, %v946
  %v972 = vmul.f32 %v947, %v947
  %v973 = vmul.f32 %v948, %v948
  %v974 = vmul.f32 %v949, %v949
  %v975 = vmul.f32 %v950, %v950
  %v976 = vmul.f32 %v951, %v951
  %v977 = vmul.f32 %v952, %v952
  %v978 = vmul.f32 %v953, %v953
  %v979 = vmul.f32 %v954, %v954
  %v980 = vmul.f32 %v955, %v955
  %v981 = vmul.f32 %v956, %v956
  %v982 = vmul.f32 %v957, %v957
  %v983 = vmul.f32 %v958, %v958
  %v984 = vmul.f32 %v959, %v959
  %v985 = vmul.f32 %v960, %v960
  %v986 = vmul.f32 %v961, %v961
  %v987 = vmul.f32 %v962, %v962
  %v988 = vmul.f32 %v963, %v963
  %v989 = vmul.f32 %v964, %v964
  %v990 = vmul.f32 %v965, %v965
  %v991 = vmul.f32 %v966, %v966
  %v992 = vmul.f32 %v967, %v967
  %v993 = vmul.f32 %v968, %v968
  %v994 = vmul.f32 %v969, %v969
  %v995 = vmul.f32 %v970, %v970
  %v996 = vmul.f32 %v971, %v971
  %v997 = vsel %vm69, %v972, 0.0
  %998 = vadd.xlane.f32.xlu0 %v997
  %v999 = vpop.xlane.xlu0 %998
  %v1000 = vsel %vm69, %v973, 0.0
  %1001 = vadd.xlane.f32.xlu0 %v1000
  %v1002 = vpop.xlane.xlu0 %1001
  %v1003 = vsel %vm69, %v974, 0.0
  %1004 = vadd.xlane.f32.xlu0 %v1003
  %v1005 = vpop.xlane.xlu0 %1004
  %v1006 = vsel %vm69, %v975, 0.0
  %1007 = vadd.xlane.f32.xlu0 %v1006
  %v1008 = vpop.xlane.xlu0 %1007
  %v1009 = vsel %vm69, %v976, 0.0
  %1010 = vadd.xlane.f32.xlu0 %v1009
  %v1011 = vpop.xlane.xlu0 %1010
  %v1012 = vsel %vm69, %v977, 0.0
  %1013 = vadd.xlane.f32.xlu0 %v1012
  %v1014 = vpop.xlane.xlu0 %1013
  %v1015 = vsel %vm69, %v978, 0.0
  %1016 = vadd.xlane.f32.xlu0 %v1015
  %v1017 = vpop.xlane.xlu0 %1016
  %v1018 = vsel %vm69, %v979, 0.0
  %1019 = vadd.xlane.f32.xlu0 %v1018
  %v1020 = vpop.xlane.xlu0 %1019
  %v1021 = vsel %vm69, %v980, 0.0
  %1022 = vadd.xlane.f32.xlu0 %v1021
  %v1023 = vpop.xlane.xlu0 %1022
  %v1024 = vsel %vm69, %v981, 0.0
  %1025 = vadd.xlane.f32.xlu0 %v1024
  %v1026 = vpop.xlane.xlu0 %1025
  %v1027 = vsel %vm69, %v982, 0.0
  %1028 = vadd.xlane.f32.xlu0 %v1027
  %v1029 = vpop.xlane.xlu0 %1028
  %v1030 = vsel %vm69, %v983, 0.0
  %1031 = vadd.xlane.f32.xlu0 %v1030
  %v1032 = vpop.xlane.xlu0 %1031
  %v1033 = vsel %vm69, %v984, 0.0
  %1034 = vadd.xlane.f32.xlu0 %v1033
  %v1035 = vpop.xlane.xlu0 %1034
  %v1036 = vsel %vm69, %v985, 0.0
  %1037 = vadd.xlane.f32.xlu0 %v1036
  %v1038 = vpop.xlane.xlu0 %1037
  %v1039 = vsel %vm69, %v986, 0.0
  %1040 = vadd.xlane.f32.xlu0 %v1039
  %v1041 = vpop.xlane.xlu0 %1040
  %v1042 = vsel %vm69, %v987, 0.0
  %1043 = vadd.xlane.f32.xlu0 %v1042
  %v1044 = vpop.xlane.xlu0 %1043
  %v1045 = vsel %vm69, %v988, 0.0
  %1046 = vadd.xlane.f32.xlu0 %v1045
  %v1047 = vpop.xlane.xlu0 %1046
  %v1048 = vsel %vm69, %v989, 0.0
  %1049 = vadd.xlane.f32.xlu0 %v1048
  %v1050 = vpop.xlane.xlu0 %1049
  %v1051 = vsel %vm69, %v990, 0.0
  %1052 = vadd.xlane.f32.xlu0 %v1051
  %v1053 = vpop.xlane.xlu0 %1052
  %v1054 = vsel %vm69, %v991, 0.0
  %1055 = vadd.xlane.f32.xlu0 %v1054
  %v1056 = vpop.xlane.xlu0 %1055
  %v1057 = vsel %vm69, %v992, 0.0
  %1058 = vadd.xlane.f32.xlu0 %v1057
  %v1059 = vpop.xlane.xlu0 %1058
  %v1060 = vsel %vm69, %v993, 0.0
  %1061 = vadd.xlane.f32.xlu0 %v1060
  %v1062 = vpop.xlane.xlu0 %1061
  %v1063 = vsel %vm69, %v994, 0.0
  %1064 = vadd.xlane.f32.xlu0 %v1063
  %v1065 = vpop.xlane.xlu0 %1064
  %v1066 = vsel %vm69, %v995, 0.0
  %1067 = vadd.xlane.f32.xlu0 %v1066
  %v1068 = vpop.xlane.xlu0 %1067
  %v1069 = vsel %vm69, %v996, 0.0
  %1070 = vadd.xlane.f32.xlu0 %v1069
  %v1071 = vpop.xlane.xlu0 %1070
  %v1072 = vmul.f32 %v999, %v921
  %v1073 = vmul.f32 %v1002, %v921
  %v1074 = vmul.f32 %v1005, %v921
  %v1075 = vmul.f32 %v1008, %v921
  %v1076 = vmul.f32 %v1011, %v921
  %v1077 = vmul.f32 %v1014, %v921
  %v1078 = vmul.f32 %v1017, %v921
  %v1079 = vmul.f32 %v1020, %v921
  %v1080 = vmul.f32 %v1023, %v921
  %v1081 = vmul.f32 %v1026, %v921
  %v1082 = vmul.f32 %v1029, %v921
  %v1083 = vmul.f32 %v1032, %v921
  %v1084 = vmul.f32 %v1035, %v921
  %v1085 = vmul.f32 %v1038, %v921
  %v1086 = vmul.f32 %v1041, %v921
  %v1087 = vmul.f32 %v1044, %v921
  %v1088 = vmul.f32 %v1047, %v921
  %v1089 = vmul.f32 %v1050, %v921
  %v1090 = vmul.f32 %v1053, %v921
  %v1091 = vmul.f32 %v1056, %v921
  %v1092 = vmul.f32 %v1059, %v921
  %v1093 = vmul.f32 %v1062, %v921
  %v1094 = vmul.f32 %v1065, %v921
  %v1095 = vmul.f32 %v1068, %v921
  %v1096 = vmul.f32 %v1071, %v921
  %v1097 = vadd.f32 %v1072, 1e-05
  %v1098 = vadd.f32 %v1073, 1e-05
  %v1099 = vadd.f32 %v1074, 1e-05
  %v1100 = vadd.f32 %v1075, 1e-05
  %v1101 = vadd.f32 %v1076, 1e-05
  %v1102 = vadd.f32 %v1077, 1e-05
  %v1103 = vadd.f32 %v1078, 1e-05
  %v1104 = vadd.f32 %v1079, 1e-05
  %v1105 = vadd.f32 %v1080, 1e-05
  %v1106 = vadd.f32 %v1081, 1e-05
  %v1107 = vadd.f32 %v1082, 1e-05
  %v1108 = vadd.f32 %v1083, 1e-05
  %v1109 = vadd.f32 %v1084, 1e-05
  %v1110 = vadd.f32 %v1085, 1e-05
  %v1111 = vadd.f32 %v1086, 1e-05
  %v1112 = vadd.f32 %v1087, 1e-05
  %v1113 = vadd.f32 %v1088, 1e-05
  %v1114 = vadd.f32 %v1089, 1e-05
  %v1115 = vadd.f32 %v1090, 1e-05
  %v1116 = vadd.f32 %v1091, 1e-05
  %v1117 = vadd.f32 %v1092, 1e-05
  %v1118 = vadd.f32 %v1093, 1e-05
  %v1119 = vadd.f32 %v1094, 1e-05
  %v1120 = vadd.f32 %v1095, 1e-05
  %v1121 = vadd.f32 %v1096, 1e-05
  %v1122 = vrsqrt.pop %v1097
  %v1123 = vmul.f32 %v1122, %v1097
  %v1124 = vmul.f32 %v1123, %v1122
  %v1125 = vmul.f32 0.5, %v1124
  %v1126 = vsub.f32 1.5, %v1125
  %v1127 = vmul.f32 %v1122, %v1126
  %vm1128 = vweird.f32 %v1097
  %vm1129 = vweird.f32 %v1122
  %vm1130 = vmor %vm1128, %vm1129
  %v1131 = vsel %vm1130, %v1122, %v1127
  %v1132 = vrsqrt.pop %v1098
  %v1133 = vmul.f32 %v1132, %v1098
  %v1134 = vmul.f32 %v1133, %v1132
  %v1135 = vmul.f32 0.5, %v1134
  %v1136 = vsub.f32 1.5, %v1135
  %v1137 = vmul.f32 %v1132, %v1136
  %vm1138 = vweird.f32 %v1098
  %vm1139 = vweird.f32 %v1132
  %vm1140 = vmor %vm1138, %vm1139
  %v1141 = vsel %vm1140, %v1132, %v1137
  %v1142 = vrsqrt.pop %v1099
  %v1143 = vmul.f32 %v1142, %v1099
  %v1144 = vmul.f32 %v1143, %v1142
  %v1145 = vmul.f32 0.5, %v1144
  %v1146 = vsub.f32 1.5, %v1145
  %v1147 = vmul.f32 %v1142, %v1146
  %vm1148 = vweird.f32 %v1099
  %vm1149 = vweird.f32 %v1142
  %vm1150 = vmor %vm1148, %vm1149
  %v1151 = vsel %vm1150, %v1142, %v1147
  %v1152 = vrsqrt.pop %v1100
  %v1153 = vmul.f32 %v1152, %v1100
  %v1154 = vmul.f32 %v1153, %v1152
  %v1155 = vmul.f32 0.5, %v1154
  %v1156 = vsub.f32 1.5, %v1155
  %v1157 = vmul.f32 %v1152, %v1156
  %vm1158 = vweird.f32 %v1100
  %vm1159 = vweird.f32 %v1152
  %vm1160 = vmor %vm1158, %vm1159
  %v1161 = vsel %vm1160, %v1152, %v1157
  %v1162 = vrsqrt.pop %v1101
  %v1163 = vmul.f32 %v1162, %v1101
  %v1164 = vmul.f32 %v1163, %v1162
  %v1165 = vmul.f32 0.5, %v1164
  %v1166 = vsub.f32 1.5, %v1165
  %v1167 = vmul.f32 %v1162, %v1166
  %vm1168 = vweird.f32 %v1101
  %vm1169 = vweird.f32 %v1162
  %vm1170 = vmor %vm1168, %vm1169
  %v1171 = vsel %vm1170, %v1162, %v1167
  %v1172 = vrsqrt.pop %v1102
  %v1173 = vmul.f32 %v1172, %v1102
  %v1174 = vmul.f32 %v1173, %v1172
  %v1175 = vmul.f32 0.5, %v1174
  %v1176 = vsub.f32 1.5, %v1175
  %v1177 = vmul.f32 %v1172, %v1176
  %vm1178 = vweird.f32 %v1102
  %vm1179 = vweird.f32 %v1172
  %vm1180 = vmor %vm1178, %vm1179
  %v1181 = vsel %vm1180, %v1172, %v1177
  %v1182 = vrsqrt.pop %v1103
  %v1183 = vmul.f32 %v1182, %v1103
  %v1184 = vmul.f32 %v1183, %v1182
  %v1185 = vmul.f32 0.5, %v1184
  %v1186 = vsub.f32 1.5, %v1185
  %v1187 = vmul.f32 %v1182, %v1186
  %vm1188 = vweird.f32 %v1103
  %vm1189 = vweird.f32 %v1182
  %vm1190 = vmor %vm1188, %vm1189
  %v1191 = vsel %vm1190, %v1182, %v1187
  %v1192 = vrsqrt.pop %v1104
  %v1193 = vmul.f32 %v1192, %v1104
  %v1194 = vmul.f32 %v1193, %v1192
  %v1195 = vmul.f32 0.5, %v1194
  %v1196 = vsub.f32 1.5, %v1195
  %v1197 = vmul.f32 %v1192, %v1196
  %vm1198 = vweird.f32 %v1104
  %vm1199 = vweird.f32 %v1192
  %vm1200 = vmor %vm1198, %vm1199
  %v1201 = vsel %vm1200, %v1192, %v1197
  %v1202 = vrsqrt.pop %v1105
  %v1203 = vmul.f32 %v1202, %v1105
  %v1204 = vmul.f32 %v1203, %v1202
  %v1205 = vmul.f32 0.5, %v1204
  %v1206 = vsub.f32 1.5, %v1205
  %v1207 = vmul.f32 %v1202, %v1206
  %vm1208 = vweird.f32 %v1105
  %vm1209 = vweird.f32 %v1202
  %vm1210 = vmor %vm1208, %vm1209
  %v1211 = vsel %vm1210, %v1202, %v1207
  %v1212 = vrsqrt.pop %v1106
  %v1213 = vmul.f32 %v1212, %v1106
  %v1214 = vmul.f32 %v1213, %v1212
  %v1215 = vmul.f32 0.5, %v1214
  %v1216 = vsub.f32 1.5, %v1215
  %v1217 = vmul.f32 %v1212, %v1216
  %vm1218 = vweird.f32 %v1106
  %vm1219 = vweird.f32 %v1212
  %vm1220 = vmor %vm1218, %vm1219
  %v1221 = vsel %vm1220, %v1212, %v1217
  %v1222 = vrsqrt.pop %v1107
  %v1223 = vmul.f32 %v1222, %v1107
  %v1224 = vmul.f32 %v1223, %v1222
  %v1225 = vmul.f32 0.5, %v1224
  %v1226 = vsub.f32 1.5, %v1225
  %v1227 = vmul.f32 %v1222, %v1226
  %vm1228 = vweird.f32 %v1107
  %vm1229 = vweird.f32 %v1222
  %vm1230 = vmor %vm1228, %vm1229
  %v1231 = vsel %vm1230, %v1222, %v1227
  %v1232 = vrsqrt.pop %v1108
  %v1233 = vmul.f32 %v1232, %v1108
  %v1234 = vmul.f32 %v1233, %v1232
  %v1235 = vmul.f32 0.5, %v1234
  %v1236 = vsub.f32 1.5, %v1235
  %v1237 = vmul.f32 %v1232, %v1236
  %vm1238 = vweird.f32 %v1108
  %vm1239 = vweird.f32 %v1232
  %vm1240 = vmor %vm1238, %vm1239
  %v1241 = vsel %vm1240, %v1232, %v1237
  %v1242 = vrsqrt.pop %v1109
  %v1243 = vmul.f32 %v1242, %v1109
  %v1244 = vmul.f32 %v1243, %v1242
  %v1245 = vmul.f32 0.5, %v1244
  %v1246 = vsub.f32 1.5, %v1245
  %v1247 = vmul.f32 %v1242, %v1246
  %vm1248 = vweird.f32 %v1109
  %vm1249 = vweird.f32 %v1242
  %vm1250 = vmor %vm1248, %vm1249
  %v1251 = vsel %vm1250, %v1242, %v1247
  %v1252 = vrsqrt.pop %v1110
  %v1253 = vmul.f32 %v1252, %v1110
  %v1254 = vmul.f32 %v1253, %v1252
  %v1255 = vmul.f32 0.5, %v1254
  %v1256 = vsub.f32 1.5, %v1255
  %v1257 = vmul.f32 %v1252, %v1256
  %vm1258 = vweird.f32 %v1110
  %vm1259 = vweird.f32 %v1252
  %vm1260 = vmor %vm1258, %vm1259
  %v1261 = vsel %vm1260, %v1252, %v1257
  %v1262 = vrsqrt.pop %v1111
  %v1263 = vmul.f32 %v1262, %v1111
  %v1264 = vmul.f32 %v1263, %v1262
  %v1265 = vmul.f32 0.5, %v1264
  %v1266 = vsub.f32 1.5, %v1265
  %v1267 = vmul.f32 %v1262, %v1266
  %vm1268 = vweird.f32 %v1111
  %vm1269 = vweird.f32 %v1262
  %vm1270 = vmor %vm1268, %vm1269
  %v1271 = vsel %vm1270, %v1262, %v1267
  %v1272 = vrsqrt.pop %v1112
  %v1273 = vmul.f32 %v1272, %v1112
  %v1274 = vmul.f32 %v1273, %v1272
  %v1275 = vmul.f32 0.5, %v1274
  %v1276 = vsub.f32 1.5, %v1275
  %v1277 = vmul.f32 %v1272, %v1276
  %vm1278 = vweird.f32 %v1112
  %vm1279 = vweird.f32 %v1272
  %vm1280 = vmor %vm1278, %vm1279
  %v1281 = vsel %vm1280, %v1272, %v1277
  %v1282 = vrsqrt.pop %v1113
  %v1283 = vmul.f32 %v1282, %v1113
  %v1284 = vmul.f32 %v1283, %v1282
  %v1285 = vmul.f32 0.5, %v1284
  %v1286 = vsub.f32 1.5, %v1285
  %v1287 = vmul.f32 %v1282, %v1286
  %vm1288 = vweird.f32 %v1113
  %vm1289 = vweird.f32 %v1282
  %vm1290 = vmor %vm1288, %vm1289
  %v1291 = vsel %vm1290, %v1282, %v1287
  %v1292 = vrsqrt.pop %v1114
  %v1293 = vmul.f32 %v1292, %v1114
  %v1294 = vmul.f32 %v1293, %v1292
  %v1295 = vmul.f32 0.5, %v1294
  %v1296 = vsub.f32 1.5, %v1295
  %v1297 = vmul.f32 %v1292, %v1296
  %vm1298 = vweird.f32 %v1114
  %vm1299 = vweird.f32 %v1292
  %vm1300 = vmor %vm1298, %vm1299
  %v1301 = vsel %vm1300, %v1292, %v1297
  %v1302 = vrsqrt.pop %v1115
  %v1303 = vmul.f32 %v1302, %v1115
  %v1304 = vmul.f32 %v1303, %v1302
  %v1305 = vmul.f32 0.5, %v1304
  %v1306 = vsub.f32 1.5, %v1305
  %v1307 = vmul.f32 %v1302, %v1306
  %vm1308 = vweird.f32 %v1115
  %vm1309 = vweird.f32 %v1302
  %vm1310 = vmor %vm1308, %vm1309
  %v1311 = vsel %vm1310, %v1302, %v1307
  %v1312 = vrsqrt.pop %v1116
  %v1313 = vmul.f32 %v1312, %v1116
  %v1314 = vmul.f32 %v1313, %v1312
  %v1315 = vmul.f32 0.5, %v1314
  %v1316 = vsub.f32 1.5, %v1315
  %v1317 = vmul.f32 %v1312, %v1316
  %vm1318 = vweird.f32 %v1116
  %vm1319 = vweird.f32 %v1312
  %vm1320 = vmor %vm1318, %vm1319
  %v1321 = vsel %vm1320, %v1312, %v1317
  %v1322 = vrsqrt.pop %v1117
  %v1323 = vmul.f32 %v1322, %v1117
  %v1324 = vmul.f32 %v1323, %v1322
  %v1325 = vmul.f32 0.5, %v1324
  %v1326 = vsub.f32 1.5, %v1325
  %v1327 = vmul.f32 %v1322, %v1326
  %vm1328 = vweird.f32 %v1117
  %vm1329 = vweird.f32 %v1322
  %vm1330 = vmor %vm1328, %vm1329
  %v1331 = vsel %vm1330, %v1322, %v1327
  %v1332 = vrsqrt.pop %v1118
  %v1333 = vmul.f32 %v1332, %v1118
  %v1334 = vmul.f32 %v1333, %v1332
  %v1335 = vmul.f32 0.5, %v1334
  %v1336 = vsub.f32 1.5, %v1335
  %v1337 = vmul.f32 %v1332, %v1336
  %vm1338 = vweird.f32 %v1118
  %vm1339 = vweird.f32 %v1332
  %vm1340 = vmor %vm1338, %vm1339
  %v1341 = vsel %vm1340, %v1332, %v1337
  %v1342 = vrsqrt.pop %v1119
  %v1343 = vmul.f32 %v1342, %v1119
  %v1344 = vmul.f32 %v1343, %v1342
  %v1345 = vmul.f32 0.5, %v1344
  %v1346 = vsub.f32 1.5, %v1345
  %v1347 = vmul.f32 %v1342, %v1346
  %vm1348 = vweird.f32 %v1119
  %vm1349 = vweird.f32 %v1342
  %vm1350 = vmor %vm1348, %vm1349
  %v1351 = vsel %vm1350, %v1342, %v1347
  %v1352 = vrsqrt.pop %v1120
  %v1353 = vmul.f32 %v1352, %v1120
  %v1354 = vmul.f32 %v1353, %v1352
  %v1355 = vmul.f32 0.5, %v1354
  %v1356 = vsub.f32 1.5, %v1355
  %v1357 = vmul.f32 %v1352, %v1356
  %vm1358 = vweird.f32 %v1120
  %vm1359 = vweird.f32 %v1352
  %vm1360 = vmor %vm1358, %vm1359
  %v1361 = vsel %vm1360, %v1352, %v1357
  %v1362 = vrsqrt.pop %v1121
  %v1363 = vmul.f32 %v1362, %v1121
  %v1364 = vmul.f32 %v1363, %v1362
  %v1365 = vmul.f32 0.5, %v1364
  %v1366 = vsub.f32 1.5, %v1365
  %v1367 = vmul.f32 %v1362, %v1366
  %vm1368 = vweird.f32 %v1121
  %vm1369 = vweird.f32 %v1362
  %vm1370 = vmor %vm1368, %vm1369
  %v1371 = vsel %vm1370, %v1362, %v1367
  %v1372 = vmul.f32 %v947, %v1131
  %v1373 = vmul.f32 %v948, %v1141
  %v1374 = vmul.f32 %v949, %v1151
  %v1375 = vmul.f32 %v950, %v1161
  %v1376 = vmul.f32 %v951, %v1171
  %v1377 = vmul.f32 %v952, %v1181
  %v1378 = vmul.f32 %v953, %v1191
  %v1379 = vmul.f32 %v954, %v1201
  %v1380 = vmul.f32 %v955, %v1211
  %v1381 = vmul.f32 %v956, %v1221
  %v1382 = vmul.f32 %v957, %v1231
  %v1383 = vmul.f32 %v958, %v1241
  %v1384 = vmul.f32 %v959, %v1251
  %v1385 = vmul.f32 %v960, %v1261
  %v1386 = vmul.f32 %v961, %v1271
  %v1387 = vmul.f32 %v962, %v1281
  %v1388 = vmul.f32 %v963, %v1291
  %v1389 = vmul.f32 %v964, %v1301
  %v1390 = vmul.f32 %v965, %v1311
  %v1391 = vmul.f32 %v966, %v1321
  %v1392 = vmul.f32 %v967, %v1331
  %v1393 = vmul.f32 %v968, %v1341
  %v1394 = vmul.f32 %v969, %v1351
  %v1395 = vmul.f32 %v970, %v1361
  %v1396 = vmul.f32 %v971, %v1371
  %v1398 = vperm.slane %v838, 0
  %v1400 = vmul.f32 %v1372, %v1398
  %v1401 = vmul.f32 %v1373, %v1398
  %v1402 = vmul.f32 %v1374, %v1398
  %v1403 = vmul.f32 %v1375, %v1398
  %v1404 = vmul.f32 %v1376, %v1398
  %v1405 = vmul.f32 %v1377, %v1398
  %v1406 = vmul.f32 %v1378, %v1398
  %v1407 = vmul.f32 %v1379, %v1398
  %v1408 = vmul.f32 %v1380, %v1398
  %v1409 = vmul.f32 %v1381, %v1398
  %v1410 = vmul.f32 %v1382, %v1398
  %v1411 = vmul.f32 %v1383, %v1398
  %v1412 = vmul.f32 %v1384, %v1398
  %v1413 = vmul.f32 %v1385, %v1398
  %v1414 = vmul.f32 %v1386, %v1398
  %v1415 = vmul.f32 %v1387, %v1398
  %v1416 = vmul.f32 %v1388, %v1398
  %v1417 = vmul.f32 %v1389, %v1398
  %v1418 = vmul.f32 %v1390, %v1398
  %v1419 = vmul.f32 %v1391, %v1398
  %v1420 = vmul.f32 %v1392, %v1398
  %v1421 = vmul.f32 %v1393, %v1398
  %v1422 = vmul.f32 %v1394, %v1398
  %v1423 = vmul.f32 %v1395, %v1398
  %v1424 = vmul.f32 %v1396, %v1398
  %v1426 = vperm.slane %v839, 0
  %v1428 = vadd.f32 %v1400, %v1426
  %v1429 = vadd.f32 %v1401, %v1426
  %v1430 = vadd.f32 %v1402, %v1426
  %v1431 = vadd.f32 %v1403, %v1426
  %v1432 = vadd.f32 %v1404, %v1426
  %v1433 = vadd.f32 %v1405, %v1426
  %v1434 = vadd.f32 %v1406, %v1426
  %v1435 = vadd.f32 %v1407, %v1426
  %v1436 = vadd.f32 %v1408, %v1426
  %v1437 = vadd.f32 %v1409, %v1426
  %v1438 = vadd.f32 %v1410, %v1426
  %v1439 = vadd.f32 %v1411, %v1426
  %v1440 = vadd.f32 %v1412, %v1426
  %v1441 = vadd.f32 %v1413, %v1426
  %v1442 = vadd.f32 %v1414, %v1426
  %v1443 = vadd.f32 %v1415, %v1426
  %v1444 = vadd.f32 %v1416, %v1426
  %v1445 = vadd.f32 %v1417, %v1426
  %v1446 = vadd.f32 %v1418, %v1426
  %v1447 = vadd.f32 %v1419, %v1426
  %v1448 = vadd.f32 %v1420, %v1426
  %v1449 = vadd.f32 %v1421, %v1426
  %v1450 = vadd.f32 %v1422, %v1426
  %v1451 = vadd.f32 %v1423, %v1426
  %v1452 = vadd.f32 %v1424, %v1426
  %1453 = vst.msk [vmem:[%s11] sm:$0xff] %vm69, %v1428
  %1454 = vst.msk [vmem:[%s11 + $0x8] sm:$0xff] %vm69, %v1429
  %1455 = vst.msk [vmem:[%s11 + $0x10] sm:$0xff] %vm69, %v1430
  %1456 = vst.msk [vmem:[%s11 + $0x18] sm:$0xff] %vm69, %v1431
  %1457 = vst.msk [vmem:[%s11 + $0x20] sm:$0xff] %vm69, %v1432
  %1458 = vst.msk [vmem:[%s11 + $0x28] sm:$0xff] %vm69, %v1433
  %1459 = vst.msk [vmem:[%s11 + $0x30] sm:$0xff] %vm69, %v1434
  %1460 = vst.msk [vmem:[%s11 + $0x38] sm:$0xff] %vm69, %v1435
  %1461 = vst.msk [vmem:[%s11 + $0x40] sm:$0xff] %vm69, %v1436
  %1462 = vst.msk [vmem:[%s11 + $0x48] sm:$0xff] %vm69, %v1437
  %1463 = vst.msk [vmem:[%s11 + $0x50] sm:$0xff] %vm69, %v1438
  %1464 = vst.msk [vmem:[%s11 + $0x58] sm:$0xff] %vm69, %v1439
  %1465 = vst.msk [vmem:[%s11 + $0x60] sm:$0xff] %vm69, %v1440
  %1466 = vst.msk [vmem:[%s11 + $0x68] sm:$0xff] %vm69, %v1441
  %1467 = vst.msk [vmem:[%s11 + $0x70] sm:$0xff] %vm69, %v1442
  %1468 = vst.msk [vmem:[%s11 + $0x78] sm:$0xff] %vm69, %v1443
  %1469 = vst.msk [vmem:[%s11 + $0x80] sm:$0xff] %vm69, %v1444
  %1470 = vst.msk [vmem:[%s11 + $0x88] sm:$0xff] %vm69, %v1445
  %1471 = vst.msk [vmem:[%s11 + $0x90] sm:$0xff] %vm69, %v1446
  %1472 = vst.msk [vmem:[%s11 + $0x98] sm:$0xff] %vm69, %v1447
  %1473 = vst.msk [vmem:[%s11 + $0xa0] sm:$0xff] %vm69, %v1448
  %1474 = vst.msk [vmem:[%s11 + $0xa8] sm:$0xff] %vm69, %v1449
  %1475 = vst.msk [vmem:[%s11 + $0xb0] sm:$0xff] %vm69, %v1450
  %1476 = vst.msk [vmem:[%s11 + $0xb8] sm:$0xff] %vm69, %v1451
  %1477 = vst.msk [vmem:[%s11 + $0xc0] sm:$0xff] %vm69, %v1452
  // Predicated region
  $region46: #{tpu_custom_call.1} parent=0 // pred_check
    _
  $region47: #{tpu_custom_call.1} parent=0 // pred_check_branch
    %1479 = sbr.rel (0) target = $region49
  $region48: #{tpu_custom_call.1} parent=0 // pred_region
    _
  $region49: #{tpu_custom_call.1} parent=0 // pred_fallthru
    _
  // Predicated region
  $region50: #{tpu_custom_call.1} parent=0 // pred_check
    _
  $region51: #{tpu_custom_call.1} parent=0 // pred_check_branch
    %1481 = sbr.rel (0) target = $region53
  $region52: #{tpu_custom_call.1} parent=0 // pred_region
    _
  $region53: #{tpu_custom_call.1} parent=0 // pred_fallthru
    _

</llo_original>
